<compile_context>
chip_gen: v5e
topology: v5e:2x2
jax: 0.10.0
libtpu: 0.0.40
codegen_flags: <defaults>
</compile_context>

<pallas_src>
import functools

import jax
import jax.numpy as jnp
from jax import lax
from jax.experimental import pallas as pl
from jax.experimental.pallas import tpu as pltpu

_MIB = 1024 * 1024


# --------------------------------------------------------------- VMEM budgeting helpers
def _vmem_capacity_bytes():
    """Physical VMEM of the current generation (64 MiB v7x, 128 MiB v5e/v6e)."""
    try:
        info = pltpu.get_tpu_info()
        cap = int(getattr(info, "vmem_capacity_bytes", 0) or 0)
        if cap > 0:
            return cap
    except Exception:
        pass
    return 64 * _MIB  # conservative fallback (v7x-sized)


def _pick_time_chunk(num_vals, step_bytes):
    """Largest time-chunk Tc (a divisor of num_vals) whose double-buffered slab fits
    a conservative slice of VMEM.  Tc == num_vals -> grid collapses to (1,)."""
    budget = _vmem_capacity_bytes() // 3            # headroom for output + compiler scratch
    cap_steps = max(1, budget // (2 * max(step_bytes, 1)))   # x2: double buffering
    if cap_steps >= num_vals:
        return num_vals
    best = 1
    for c in range(1, num_vals + 1):
        if num_vals % c == 0 and c <= cap_steps:
            best = c
    # TODO(synk): support a ragged last chunk (pad the time axis + mask dt) instead of
    # forcing Tc to divide num_vals.
    return best


# --------------------------------------------------------------- single-step kernels
def _adj_outside_kernel(idx_ref, x_ref, w_ref, p_ref, out_ref):
    # architecture == 0 ("outside"): no bias needed at all.
    x = x_ref[...].astype(jnp.float32)
    w = w_ref[...]
    p = p_ref[...].astype(jnp.float32)
    th = jnp.tanh(x)
    neg_sp = th * th - 1.0                                # == -tanh'(x): minus folded here
    out = jnp.dot(neg_sp * p, w, preferred_element_type=jnp.float32)
    out_ref[...] = out.astype(out_ref.dtype)


def _adj_inside_kernel(idx_ref, x_ref, w_ref, b_ref, p_ref, out_ref):
    # architecture == -1 ("inside"): pre-activation re-computed from the trajectory.
    x = x_ref[...]
    w = w_ref[...]
    p = p_ref[...].astype(jnp.float32)
    # x @ W^T without materializing a transpose: contract last dims on the MXU.
    pre = lax.dot_general(x, w, (((1,), (1,)), ((), ())),
                          preferred_element_type=jnp.float32) + b_ref[...]
    th = jnp.tanh(pre)
    neg_sp = th * th - 1.0
    out = jnp.dot(neg_sp * p, w, preferred_element_type=jnp.float32)
    out_ref[...] = out.astype(out_ref.dtype)


def _adj_bottleneck_kernel(idx_ref, x_ref, a_ref, b_ref, w_ref, p_ref, out_ref):
    # architecture >= 1 ("bottleneck"): fc1 (d->h, weight A), fc3 (h->d, weight W).
    x = x_ref[...]
    a = a_ref[...]
    w = w_ref[...]
    p = p_ref[...].astype(jnp.float32)
    # p @ W is independent of the tanh chain -> MXU pass overlaps the EUP tanh.
    pw = jnp.dot(p, w, preferred_element_type=jnp.float32)                  # (B, h)
    pre = lax.dot_general(x, a, (((1,), (1,)), ((), ())),                   # x @ A^T
                          preferred_element_type=jnp.float32) + b_ref[...]  # (B, h)
    th = jnp.tanh(pre)
    neg_sp = th * th - 1.0                                                  # == -tanh'
    out = jnp.dot(neg_sp * pw, a, preferred_element_type=jnp.float32)       # (B, d)
    out_ref[...] = out.astype(out_ref.dtype)


# --------------------------------------------------------------- single-step wrapper
@functools.partial(jax.jit, static_argnames=("T", "num_vals", "architecture"))
def adj_dynamics_forward(t, p, x_traj, params, *, T, num_vals, architecture):
    """Pallas equivalent of adj_Dynamics.forward(t, p) with non_linearity='tanh'.
    The time index is a traced scalar passed via scalar prefetch, so only the needed
    time slice of x_traj / weights is DMA'd and the whole call jits."""
    delta_t = T / num_vals
    # int(t / delta_t) with an epsilon so an exact multiple of dt does not truncate down
    # due to f32 rounding; clamp so out-of-range t can never index outside the arrays
    # (TPU VMEM reads are not bounds-checked).
    k = jnp.floor(jnp.asarray(t, jnp.float32) / jnp.float32(delta_t) + 1e-6).astype(jnp.int32)
    idx = jnp.clip(num_vals - 1 - k, 0, num_vals - 1).reshape((1,))
    B, d = p.shape

    if architecture < 1:
        w_time = params["w_time"]          # (N, d, d)   fc2_time[i].weight
        if architecture == -1:
            b_time = params["b_time"]      # (N, 1, d)   fc2_time[i].bias
            in_specs = [
                pl.BlockSpec((None, B, d), lambda i, idx: (idx[0], 0, 0)),  # x_traj[n-k-1]
                pl.BlockSpec((None, d, d), lambda i, idx: (idx[0], 0, 0)),  # w_t
                pl.BlockSpec((None, 1, d), lambda i, idx: (idx[0], 0, 0)),  # b_t
                pl.BlockSpec((B, d), lambda i, idx: (0, 0)),                # p
            ]
            args = (idx, x_traj, w_time, b_time, p)
            kernel = _adj_inside_kernel
        else:
            # architecture == 0: bias never read -> don't DMA it at all.
            in_specs = [
                pl.BlockSpec((None, B, d), lambda i, idx: (idx[0], 0, 0)),
                pl.BlockSpec((None, d, d), lambda i, idx: (idx[0], 0, 0)),
                pl.BlockSpec((B, d), lambda i, idx: (0, 0)),
            ]
            args = (idx, x_traj, w_time, p)
            kernel = _adj_outside_kernel
    else:
        a_time = params["a_time"]          # (N, h, d)   fc1_time[i].weight
        b_time = params["b_time"]          # (N, 1, h)   fc1_time[i].bias
        w_time = params["w_time"]          # (N, d, h)   fc3_time[i].weight
        h = a_time.shape[1]
        in_specs = [
            pl.BlockSpec((None, B, d), lambda i, idx: (idx[0], 0, 0)),      # x_traj slice
            pl.BlockSpec((None, h, d), lambda i, idx: (idx[0], 0, 0)),      # a_t
            pl.BlockSpec((None, 1, h), lambda i, idx: (idx[0], 0, 0)),      # b_t
            pl.BlockSpec((None, d, h), lambda i, idx: (idx[0], 0, 0)),      # w_t
            pl.BlockSpec((B, d), lambda i, idx: (0, 0)),                    # p
        ]
        args = (idx, x_traj, a_time, b_time, w_time, p)
        kernel = _adj_bottleneck_kernel

    return pl.pallas_call(
        kernel,
        out_shape=jax.ShapeDtypeStruct((B, d), p.dtype),
        grid_spec=pltpu.PrefetchScalarGridSpec(
            num_scalar_prefetch=1,
            grid=(1,),
            in_specs=in_specs,
            out_specs=pl.BlockSpec((B, d), lambda i, idx: (0, 0)),
        ),
        compiler_params=pltpu.CompilerParams(dimension_semantics=("arbitrary",)),
    )(*args)


# --------------------------------------------------------------- fused Euler-solve kernels
def _euler_simple_kernel(x_ref, w_ref, *rest, dt, tc, inside):
    # One grid step processes a chunk of `tc` Euler steps (arch < 1).
    if inside:
        b_ref, p0_ref, out_ref = rest
    else:
        b_ref = None
        p0_ref, out_ref = rest
    c = pl.program_id(0)

    @pl.when(c == 0)
    def _():
        out_ref[...] = p0_ref[...].astype(out_ref.dtype)   # init resident accumulator

    def step(j, p):
        i = tc - 1 - j                                     # chunk traversed in reverse time
        w = w_ref[i]
        if inside:
            pre = lax.dot_general(x_ref[i], w, (((1,), (1,)), ((), ())),
                                  preferred_element_type=jnp.float32) + b_ref[i]
        else:
            pre = x_ref[i].astype(jnp.float32)
        th = jnp.tanh(pre)
        neg_sp = th * th - 1.0                              # == -tanh'
        dp = jnp.dot(neg_sp * p, w, preferred_element_type=jnp.float32)
        return p + dt * dp                                  # p_{s+1} = p_s + dt * dot(p)

    unroll = True if tc <= 32 else 8
    out_ref[...] = lax.fori_loop(0, tc, step, out_ref[...], unroll=unroll)


def _euler_bottleneck_kernel(x_ref, a_ref, b_ref, w_ref, p0_ref, out_ref, *, dt, tc):
    c = pl.program_id(0)

    @pl.when(c == 0)
    def _():
        out_ref[...] = p0_ref[...].astype(out_ref.dtype)

    def step(j, p):
        i = tc - 1 - j
        a = a_ref[i]
        w = w_ref[i]
        pw = jnp.dot(p, w, preferred_element_type=jnp.float32)                  # MXU, overlaps tanh
        pre = lax.dot_general(x_ref[i], a, (((1,), (1,)), ((), ())),            # x @ A^T
                              preferred_element_type=jnp.float32) + b_ref[i]
        th = jnp.tanh(pre)
        neg_sp = th * th - 1.0
        dp = jnp.dot(neg_sp * pw, a, preferred_element_type=jnp.float32)
        return p + dt * dp

    unroll = True if tc <= 32 else 8
    out_ref[...] = lax.fori_loop(0, tc, step, out_ref[...], unroll=unroll)


@functools.partial(jax.jit,
                   static_argnames=("T", "num_vals", "architecture", "compute_dtype"))
def adj_dynamics_euler_solve(p0, x_traj, params, *, T, num_vals, architecture,
                             compute_dtype=None):
    """All num_vals adjoint Euler steps in ONE pallas_call.  The time axis is chunked
    into Tc-step slabs (Tc sized from the per-generation VMEM budget); each chunk is one
    coalesced DMA per array and an unrolled in-kernel loop; p accumulates directly in the
    resident f32 output block (constant out index_map -> stays in VMEM, one HBM writeback).
    compute_dtype=jnp.bfloat16 stores trajectory/weights in bf16 (half the DMA bytes) while
    the accumulator / tanh chain stay f32."""
    dt = float(T) / num_vals
    B, d = p0.shape
    out_dtype = p0.dtype
    p0f = p0.astype(jnp.float32)

    cast = (lambda a: a.astype(compute_dtype)) if compute_dtype is not None else (lambda a: a)
    itemsize = (jnp.dtype(compute_dtype).itemsize if compute_dtype is not None
                else jnp.dtype(x_traj.dtype).itemsize)

    if architecture < 1:
        inside = architecture == -1
        w_time = cast(params["w_time"])                     # (N, d, d)
        step_elems = B * d + d * d + (d if inside else 0)
        tc = _pick_time_chunk(num_vals, step_elems * itemsize)
        nchunks = num_vals // tc
        kernel = functools.partial(_euler_simple_kernel, dt=dt, tc=tc, inside=inside)
        in_specs = [
            pl.BlockSpec((tc, B, d), lambda c: (nchunks - 1 - c, 0, 0)),   # x_traj chunk
            pl.BlockSpec((tc, d, d), lambda c: (nchunks - 1 - c, 0, 0)),   # w_t chunk
        ]
        args = [cast(x_traj), w_time]
        if inside:
            in_specs.append(pl.BlockSpec((tc, 1, d), lambda c: (nchunks - 1 - c, 0, 0)))
            args.append(cast(params["b_time"]))
        in_specs.append(pl.BlockSpec((B, d), lambda c: (0, 0)))            # p0
        args.append(p0f)
    else:
        a_time = cast(params["a_time"])                     # (N, h, d)
        b_time = cast(params["b_time"])                     # (N, 1, h)
        w_time = cast(params["w_time"])                     # (N, d, h)
        h = a_time.shape[1]
        step_elems = B * d + h * d + h + d * h
        tc = _pick_time_chunk(num_vals, step_elems * itemsize)
        nchunks = num_vals // tc
        kernel = functools.partial(_euler_bottleneck_kernel, dt=dt, tc=tc)
        in_specs = [
            pl.BlockSpec((tc, B, d), lambda c: (nchunks - 1 - c, 0, 0)),
            pl.BlockSpec((tc, h, d), lambda c: (nchunks - 1 - c, 0, 0)),
            pl.BlockSpec((tc, 1, h), lambda c: (nchunks - 1 - c, 0, 0)),
            pl.BlockSpec((tc, d, h), lambda c: (nchunks - 1 - c, 0, 0)),
            pl.BlockSpec((B, d), lambda c: (0, 0)),
        ]
        args = [cast(x_traj), a_time, b_time, w_time, p0f]

    # Explicit VMEM limit sized from the chunk (v7x: 64 MiB physical; v5e default scoped 16 MiB).
    chunk_bytes = tc * step_elems * itemsize
    needed = 2 * chunk_bytes + 3 * (B * d * 4) + (4 * _MIB)
    cap = _vmem_capacity_bytes()
    vmem_limit = int(min(cap - 4 * _MIB, max(needed, 32 * _MIB)))

    out = pl.pallas_call(
        kernel,
        out_shape=jax.ShapeDtypeStruct((B, d), jnp.float32),
        grid_spec=pltpu.PrefetchScalarGridSpec(
            num_scalar_prefetch=0,
            grid=(nchunks,),
            in_specs=in_specs,
            out_specs=pl.BlockSpec((B, d), lambda c: (0, 0)),
        ),
        compiler_params=pltpu.CompilerParams(
            dimension_semantics=("arbitrary",),
            vmem_limit_bytes=vmem_limit),
    )(*args)
    return out.astype(out_dtype)
    # TODO(synk): if production B grows, add a leading batch grid axis ("parallel") so v7x's
    # two TensorCores split the batch; pad d/h to multiples of 128 (lane axis) once.


# --------------------------------------------------------------- references (plain JAX)
def _adj_ref_step(i, p, x_traj, params, architecture):
    """Literal (diag_embed-based) port of the PyTorch forward, at time index i."""
    x = x_traj[i]
    if architecture < 1:
        w = params["w_time"][i]
        b = params["b_time"][i, 0]
        if architecture == -1:
            x = x @ w.T + b
        x_w = 1.0 - jnp.tanh(x) ** 2
        grad = w.T[None, :, :] * x_w[:, None, :]                 # W^T @ diag_embed(x_w)
        return -jnp.einsum("bij,bj->bi", grad, p)
    else:
        a = params["a_time"][i]
        b = params["b_time"][i, 0]
        w = params["w_time"][i]
        x_w = 1.0 - jnp.tanh(x @ a.T + b) ** 2                   # (B, h)
        x_w_mat = a.T[None, :, :] * x_w[:, None, :]              # A^T @ diag_embed(x_w)
        grad = jnp.einsum("bdh,hk->bdk", x_w_mat, w.T)           # (B, d, d)
        return -jnp.einsum("bij,bj->bi", grad, p)


def adj_dynamics_ref(t, p, x_traj, params, *, T, num_vals, architecture):
    delta_t = T / num_vals
    k = int(t / delta_t)
    return _adj_ref_step(num_vals - k - 1, p, x_traj, params, architecture)


def euler_solve_ref(p0, x_traj, params, *, T, num_vals, architecture):
    dt = T / num_vals
    p = p0
    for s in range(num_vals):
        p = p + dt * _adj_ref_step(num_vals - 1 - s, p, x_traj, params, architecture)
    return p


# --------------------------------------------------------------- main
if __name__ == "__main__":
    key = jax.random.PRNGKey(0)
    B, d, h = 2, 16, 32          # batch, state dim, bottleneck hidden dim
    num_vals, T = 5, 1.0
    t = 0.3                      # -> k = 1, time index = num_vals - k - 1 = 3

    ks = jax.random.split(key, 7)
    x_traj = jax.random.normal(ks[0], (num_vals, B, d), jnp.float32)
    p = jax.random.normal(ks[1], (B, d), jnp.float32)

    # architecture >= 1 (bottleneck): fc1 (d -> h), fc3 (h -> d)
    a_time = jax.random.normal(ks[2], (num_vals, h, d), jnp.float32) / jnp.sqrt(d)
    b1_time = jax.random.normal(ks[3], (num_vals, 1, h), jnp.float32) * 0.1
    w3_time = jax.random.normal(ks[4], (num_vals, d, h), jnp.float32) / jnp.sqrt(h)
    params_bneck = dict(a_time=a_time, b_time=b1_time, w_time=w3_time)

    # architecture < 1: fc2 (d -> d)
    w2_time = jax.random.normal(ks[5], (num_vals, d, d), jnp.float32) / jnp.sqrt(d)
    b2_time = jax.random.normal(ks[6], (num_vals, 1, d), jnp.float32) * 0.1
    params_simple = dict(w_time=w2_time, b_time=b2_time)

    # ---- single-step forward (module semantics) ----
    for arch, prm in ((1, params_bneck), (-1, params_simple), (0, params_simple)):
        out = adj_dynamics_forward(t, p, x_traj, prm,
                                   T=T, num_vals=num_vals, architecture=arch)
        jax.block_until_ready(out)
        ref = adj_dynamics_ref(t, p, x_traj, prm,
                               T=T, num_vals=num_vals, architecture=arch)
        assert out.shape == (B, d)
        assert jnp.allclose(out, ref, atol=1e-3, rtol=1e-3), f"forward mismatch arch={arch}"

    # ---- fused multi-step Euler solve (time chunked, p resident in VMEM) ----
    for arch, prm in ((1, params_bneck), (-1, params_simple), (0, params_simple)):
        pt = adj_dynamics_euler_solve(p, x_traj, prm,
                                      T=T, num_vals=num_vals, architecture=arch)
        jax.block_until_ready(pt)
        pt_ref = euler_solve_ref(p, x_traj, prm,
                                 T=T, num_vals=num_vals, architecture=arch)
        assert jnp.allclose(pt, pt_ref, atol=1e-3, rtol=1e-3), f"euler mismatch arch={arch}"

    # ---- bf16-stored weights/trajectory (halved DMA bytes), f32 accumulator ----
    pt_bf16 = adj_dynamics_euler_solve(p, x_traj, params_bneck,
                                       T=T, num_vals=num_vals, architecture=1,
                                       compute_dtype=jnp.bfloat16)
    jax.block_until_ready(pt_bf16)
    pt_ref = euler_solve_ref(p, x_traj, params_bneck,
                             T=T, num_vals=num_vals, architecture=1)
    assert bool(jnp.all(jnp.isfinite(pt_bf16)))
    assert jnp.allclose(pt_bf16, pt_ref, atol=1e-1, rtol=1e-1), "euler bf16 mismatch"

    print("KERNEL_OK")
</pallas_src>

<mosaic_0001>
module attributes {stable_mosaic.version = 11 : i64} {
  func.func @_adj_bottleneck_kernel(%arg0: i32, %arg1: memref<1xi32, #tpu.memory_space<smem>>, %arg2: memref<1x2x16xf32, #tpu.memory_space<vmem>>, %arg3: memref<1x32x16xf32, #tpu.memory_space<vmem>>, %arg4: memref<1x1x32xf32, #tpu.memory_space<vmem>>, %arg5: memref<1x16x32xf32, #tpu.memory_space<vmem>>, %arg6: memref<2x16xf32, #tpu.memory_space<vmem>>, %arg7: memref<2x16xf32, #tpu.memory_space<vmem>>) attributes {dimension_semantics = [#tpu.dimension_semantics<arbitrary>], iteration_bounds = array<i64: 1>, scalar_prefetch = 1 : i64, scratch_operands = 0 : i64, tpu.core_type = #tpu.core_type<tc>, window_params = [{transform_indices = @transform_0, window_bounds = array<i64: 1, 2, 16>}, {transform_indices = @transform_1, window_bounds = array<i64: 1, 32, 16>}, {transform_indices = @transform_2, window_bounds = array<i64: 1, 1, 32>}, {transform_indices = @transform_3, window_bounds = array<i64: 1, 16, 32>}, {pipeline_mode = #tpu.pipeline_mode<synchronous>, transform_indices = @transform_4, window_bounds = array<i64: 2, 16>}, {pipeline_mode = #tpu.pipeline_mode<synchronous>, transform_indices = @transform_5, window_bounds = array<i64: 2, 16>}]} {
    %c0 = arith.constant 0 : index
    %c0_0 = arith.constant 0 : index
    %c0_1 = arith.constant 0 : index
    %0 = vector.load %arg2[%c0, %c0_0, %c0_1] : memref<1x2x16xf32, #tpu.memory_space<vmem>>, vector<1x2x16xf32>
    %1 = vector.shape_cast %0 : vector<1x2x16xf32> to vector<2x16xf32>
    %c0_2 = arith.constant 0 : index
    %c0_3 = arith.constant 0 : index
    %c0_4 = arith.constant 0 : index
    %2 = vector.load %arg3[%c0_2, %c0_3, %c0_4] : memref<1x32x16xf32, #tpu.memory_space<vmem>>, vector<1x32x16xf32>
    %3 = vector.shape_cast %2 : vector<1x32x16xf32> to vector<32x16xf32>
    %c0_5 = arith.constant 0 : index
    %c0_6 = arith.constant 0 : index
    %c0_7 = arith.constant 0 : index
    %4 = vector.load %arg5[%c0_5, %c0_6, %c0_7] : memref<1x16x32xf32, #tpu.memory_space<vmem>>, vector<1x16x32xf32>
    %5 = vector.shape_cast %4 : vector<1x16x32xf32> to vector<16x32xf32>
    %c0_8 = arith.constant 0 : index
    %c0_9 = arith.constant 0 : index
    %6 = vector.load %arg6[%c0_8, %c0_9] : memref<2x16xf32, #tpu.memory_space<vmem>>, vector<2x16xf32>
    %cst = arith.constant dense<0.000000e+00> : vector<2x32xf32>
    %7 = tpu.matmul %6, %5, %cst {dimension_numbers = #tpu.dot_dimension_numbers<[1], [0], [0], [1], [0, 0, 1, 1], [], []>} : vector<2x16xf32>, vector<16x32xf32>, vector<2x32xf32> -> vector<2x32xf32>
    %cst_10 = arith.constant dense<0.000000e+00> : vector<2x32xf32>
    %8 = tpu.matmul %1, %3, %cst_10 {dimension_numbers = #tpu.dot_dimension_numbers<[1], [1], [0], [0], [0, 0, 1, 0], [], []>} : vector<2x16xf32>, vector<32x16xf32>, vector<2x32xf32> -> vector<2x32xf32>
    %c0_11 = arith.constant 0 : index
    %c0_12 = arith.constant 0 : index
    %c0_13 = arith.constant 0 : index
    %9 = vector.load %arg4[%c0_11, %c0_12, %c0_13] : memref<1x1x32xf32, #tpu.memory_space<vmem>>, vector<1x1x32xf32>
    %10 = vector.shape_cast %9 : vector<1x1x32xf32> to vector<1x32xf32>
    %11 = vector.broadcast %10 : vector<1x32xf32> to vector<2x32xf32>
    %12 = arith.addf %8, %11 : vector<2x32xf32>
    %13 = math.tanh %12 : vector<2x32xf32>
    %14 = arith.mulf %13, %13 : vector<2x32xf32>
    %cst_14 = arith.constant 1.000000e+00 : f32
    %15 = vector.broadcast %cst_14 : f32 to vector<2x32xf32>
    %16 = arith.subf %14, %15 : vector<2x32xf32>
    %17 = arith.mulf %16, %7 : vector<2x32xf32>
    %cst_15 = arith.constant dense<0.000000e+00> : vector<2x16xf32>
    %18 = tpu.matmul %17, %3, %cst_15 {dimension_numbers = #tpu.dot_dimension_numbers<[1], [0], [0], [1], [0, 0, 1, 1], [], []>} : vector<2x32xf32>, vector<32x16xf32>, vector<2x16xf32> -> vector<2x16xf32>
    %c0_16 = arith.constant 0 : index
    %c0_17 = arith.constant 0 : index
    %19 = vector.load %arg7[%c0_16, %c0_17] : memref<2x16xf32, #tpu.memory_space<vmem>>, vector<2x16xf32>
    tpu.vector_store %arg7[%c0_16, %c0_17], %18 {strides = array<i32>} : memref<2x16xf32, #tpu.memory_space<vmem>>, vector<2x16xf32>,
    return
  }
  func.func @transform_0(%arg0: i32, %arg1: memref<1xi32, #tpu.memory_space<smem>>) -> (i32, i32, i32) {
    %c0 = arith.constant 0 : index
    %0 = memref.load %arg1[%c0] : memref<1xi32, #tpu.memory_space<smem>>
    %c0_i32 = arith.constant 0 : i32
    %c0_i32_0 = arith.constant 0 : i32
    %c0_i32_1 = arith.constant 0 : i32
    return %0, %c0_i32, %c0_i32_0 : i32, i32, i32
  }
  func.func @transform_1(%arg0: i32, %arg1: memref<1xi32, #tpu.memory_space<smem>>) -> (i32, i32, i32) {
    %c0 = arith.constant 0 : index
    %0 = memref.load %arg1[%c0] : memref<1xi32, #tpu.memory_space<smem>>
    %c0_i32 = arith.constant 0 : i32
    %c0_i32_0 = arith.constant 0 : i32
    %c0_i32_1 = arith.constant 0 : i32
    return %0, %c0_i32, %c0_i32_0 : i32, i32, i32
  }
  func.func @transform_2(%arg0: i32, %arg1: memref<1xi32, #tpu.memory_space<smem>>) -> (i32, i32, i32) {
    %c0 = arith.constant 0 : index
    %0 = memref.load %arg1[%c0] : memref<1xi32, #tpu.memory_space<smem>>
    %c0_i32 = arith.constant 0 : i32
    %c0_i32_0 = arith.constant 0 : i32
    %c0_i32_1 = arith.constant 0 : i32
    return %0, %c0_i32, %c0_i32_0 : i32, i32, i32
  }
  func.func @transform_3(%arg0: i32, %arg1: memref<1xi32, #tpu.memory_space<smem>>) -> (i32, i32, i32) {
    %c0 = arith.constant 0 : index
    %0 = memref.load %arg1[%c0] : memref<1xi32, #tpu.memory_space<smem>>
    %c0_i32 = arith.constant 0 : i32
    %c0_i32_0 = arith.constant 0 : i32
    %c0_i32_1 = arith.constant 0 : i32
    return %0, %c0_i32, %c0_i32_0 : i32, i32, i32
  }
  func.func @transform_4(%arg0: i32, %arg1: memref<1xi32, #tpu.memory_space<smem>>) -> (i32, i32) {
    %c0_i32 = arith.constant 0 : i32
    %c0_i32_0 = arith.constant 0 : i32
    %c0_i32_1 = arith.constant 0 : i32
    return %c0_i32, %c0_i32_0 : i32, i32
  }
  func.func @transform_5(%arg0: i32, %arg1: memref<1xi32, #tpu.memory_space<smem>>) -> (i32, i32) {
    %c0_i32 = arith.constant 0 : i32
    %c0_i32_0 = arith.constant 0 : i32
    %c0_i32_1 = arith.constant 0 : i32
    return %c0_i32, %c0_i32_0 : i32, i32
  }
}

</mosaic_0001>

<llo_original>
// kernel: adj_dynamics_forward.1
$region0: #{adj_dynamics_forward.1}
  #allocation0 [shape = 'u32[]', space=smem, size = 0x4, offset = 0x4, fixed_abs, tag = 'smem constant byte address 0x4 - core index']
  #allocation1 [shape = 'u32[72,128]{1,0:T(1,128)}', space=vmem, size = 0x9000, scoped, tag = 'internal scratch']
  #allocation2 [shape = 's32[1]{0}', space=sflag, size = 0x4, scoped, tag = 'scoped memory for adj_dynamics_forward.1']
  #allocation3 [shape = 's32[1]{0:T(128)S(6)}', space=smem, size = 0x200, scoped, tag = 'prefetched SMEM operand 0']
  %s0 = inlined_call_operand.<no memory space> [shape: s32[1], index: 0, kind: input, shape index: {}]
  %s1 = inlined_call_operand.vmem [shape: f32[5,2,16], index: 1, kind: input, shape index: {}]
  %s2 = inlined_call_operand.vmem [shape: f32[5,32,16], index: 2, kind: input, shape index: {}]
  %s3 = inlined_call_operand.vmem [shape: f32[5,1,32], index: 3, kind: input, shape index: {}]
  %s4 = inlined_call_operand.vmem [shape: f32[5,16,32], index: 4, kind: input, shape index: {}]
  %s5 = inlined_call_operand.vmem [shape: f32[2,16], index: 5, kind: input, shape index: {}]
  %s6 = inlined_call_operand.hbm [shape: f32[2,16], index: 6, kind: output, shape index: {}]
  %s7 = sld [smem:[#allocation0]]
  $region30: #{adj_dynamics_forward.1} parent=0
    _
  %s9 = ssub.s32 1, %s7
  %s10 = scalar_select 0, %s9, %s7
  %11 = sst [smem:[#allocation3]] %s0
  $region1: #{adj_dynamics_forward.1} parent=0
    #allocation4 [shape = 'u8[1024]{0}', space=vmem, size = 0x400, scoped, tag = 'output window, operand 0, single buffered']
    #allocation5 [shape = 's32[1]{0}', space=sflag, size = 0x4, scoped, tag = 'scoped memory for adj_dynamics_forward.1']
    %12 = vsyncpa [#allocation5], 0
    // Predicated region
    $region2: #{adj_dynamics_forward.1} parent=1 // pred_check
      _
    $region3: #{adj_dynamics_forward.1} parent=1 // pred_check_branch
      %14 = sbr.rel (0) target = $region5
    $region4: #{adj_dynamics_forward.1} parent=1 // pred_region
      %s15 = sld [smem:[#allocation3]]
      %p16 = scmp.lt.s32.totalorder %s15, 4
      %s17 = scalar_select %p16, %s15, 4
      %s18 = smul.addr %s17, 2
      %s19 = scalar_lea.vmem %s1, %s18
      %s20 = sld [smem:[#allocation3]]
    $region5: #{adj_dynamics_forward.1} parent=1 // pred_fallthru
      _
    // Predicated region
    $region6: #{adj_dynamics_forward.1} parent=1 // pred_check
      _
    $region7: #{adj_dynamics_forward.1} parent=1 // pred_check_branch
      %22 = sbr.rel (0) target = $region9
    $region8: #{adj_dynamics_forward.1} parent=1 // pred_region
      %s23 = sld [smem:[#allocation3]]
      %p24 = scmp.lt.s32.totalorder %s23, 4
      %s25 = scalar_select %p24, %s23, 4
      %s26 = smul.addr %s25, 4
      %s27 = smul.addr %s26, 8
      %s28 = scalar_lea.vmem %s2, %s27
      %s29 = sld [smem:[#allocation3]]
    $region9: #{adj_dynamics_forward.1} parent=1 // pred_fallthru
      _
    // Predicated region
    $region10: #{adj_dynamics_forward.1} parent=1 // pred_check
      _
    $region11: #{adj_dynamics_forward.1} parent=1 // pred_check_branch
      %31 = sbr.rel (0) target = $region13
    $region12: #{adj_dynamics_forward.1} parent=1 // pred_region
      %s32 = sld [smem:[#allocation3]]
      %p33 = scmp.lt.s32.totalorder %s32, 4
      %s34 = scalar_select %p33, %s32, 4
      %s35 = scalar_lea.vmem %s3, %s34
      %s36 = sld [smem:[#allocation3]]
    $region13: #{adj_dynamics_forward.1} parent=1 // pred_fallthru
      _
    // Predicated region
    $region14: #{adj_dynamics_forward.1} parent=1 // pred_check
      _
    $region15: #{adj_dynamics_forward.1} parent=1 // pred_check_branch
      %38 = sbr.rel (0) target = $region17
    $region16: #{adj_dynamics_forward.1} parent=1 // pred_region
      %s39 = sld [smem:[#allocation3]]
      %p40 = scmp.lt.s32.totalorder %s39, 4
      %s41 = scalar_select %p40, %s39, 4
      %s42 = smul.addr %s41, 2
      %s43 = smul.addr %s42, 8
      %s44 = scalar_lea.vmem %s4, %s43
      %s45 = sld [smem:[#allocation3]]
    $region17: #{adj_dynamics_forward.1} parent=1 // pred_fallthru
      _
    // Predicated region
    $region18: #{adj_dynamics_forward.1} parent=1 // pred_check
      _
    $region19: #{adj_dynamics_forward.1} parent=1 // pred_check_branch
      %47 = sbr.rel (0) target = $region21
    $region20: #{adj_dynamics_forward.1} parent=1 // pred_region
      _
    $region21: #{adj_dynamics_forward.1} parent=1 // pred_fallthru
      _
    %s48 = sld [smem:[#allocation3]]
    %p49 = scmp.lt.s32.totalorder %s48, 4
    %s50 = scalar_select %p49, %s48, 4
    %s51 = smul.addr %s50, 2
    %s52 = scalar_lea.vmem %s1, %s51
    %s53 = sld [smem:[#allocation3]]
    %p54 = scmp.lt.s32.totalorder %s53, 4
    %s55 = scalar_select %p54, %s53, 4
    %s56 = smul.addr %s55, 4
    %s57 = smul.addr %s56, 8
    %s58 = scalar_lea.vmem %s2, %s57
    %s59 = sld [smem:[#allocation3]]
    %p60 = scmp.lt.s32.totalorder %s59, 4
    %s61 = scalar_select %p60, %s59, 4
    %s62 = scalar_lea.vmem %s3, %s61
    %s63 = sld [smem:[#allocation3]]
    %p64 = scmp.lt.s32.totalorder %s63, 4
    %s65 = scalar_select %p64, %s63, 4
    %s66 = smul.addr %s65, 2
    %s67 = smul.addr %s66, 8
    %s68 = scalar_lea.vmem %s4, %s67
    %s69 = sld [smem:[#allocation3]]
    %p70 = scmp.lt.s32.totalorder %s69, 4
    %s71 = scalar_select %p70, %s69, 4
    %s72 = smul.addr %s71, 2
    %s73 = scalar_lea.vmem %s1, %s72
    %s74 = sld [smem:[#allocation3]]
    %s75 = sld [smem:[#allocation3]]
    %p76 = scmp.lt.s32.totalorder %s75, 4
    %s77 = scalar_select %p76, %s75, 4
    %s78 = smul.addr %s77, 4
    %s79 = smul.addr %s78, 8
    %s80 = scalar_lea.vmem %s2, %s79
    %s81 = sld [smem:[#allocation3]]
    %s82 = sld [smem:[#allocation3]]
    %p83 = scmp.lt.s32.totalorder %s82, 4
    %s84 = scalar_select %p83, %s82, 4
    %s85 = scalar_lea.vmem %s3, %s84
    %s86 = sld [smem:[#allocation3]]
    %s87 = sld [smem:[#allocation3]]
    %p88 = scmp.lt.s32.totalorder %s87, 4
    %s89 = scalar_select %p88, %s87, 4
    %s90 = smul.addr %s89, 2
    %s91 = smul.addr %s90, 8
    %s92 = scalar_lea.vmem %s4, %s91
    %s93 = sld [smem:[#allocation3]]
    %v94 = vld [vmem:[%s73] sm:$0x3]
    %v95 = vld [vmem:[%s80] sm:$0xff]
    %v96 = vld [vmem:[%s80 + $0x8] sm:$0xff]
    %v97 = vld [vmem:[%s80 + $0x10] sm:$0xff]
    %v98 = vld [vmem:[%s80 + $0x18] sm:$0xff]
    %v99 = vld [vmem:[%s92] sm:$0xff]
    %v100 = vld [vmem:[%s92 + $0x8] sm:$0xff]
    %v101 = vld [vmem:[%s5] sm:$0x3]
    %vm102 = vcmask 130048
    %v104 = vsel %vm102, %v101, 0
    %106 = vmatpush.msra.mxu0 0.0
    %107 = vmatpush.msra.mxu0 0.0
    %108 = vmatpush.msra.mxu0 0.0
    %109 = vmatpush.msra.mxu0 0.0
    %110 = vmatpush.msra.mxu0 0.0
    %111 = vmatpush.msra.mxu0 0.0
    %112 = vmatpush.msra.mxu0 0.0
    %113 = vmatpush.msra.mxu0 0.0
    %114 = vmatpush.msra.mxu0 0.0
    %115 = vmatpush.msra.mxu0 0.0
    %116 = vmatpush.msra.mxu0 0.0
    %117 = vmatpush.msra.mxu0 0.0
    %118 = vmatpush.msra.mxu0 0.0
    %119 = vmatpush.msra.mxu0 0.0
    %120 = vmatpush.msra.mxu0 %v100
    %121 = vmatpush.msra.mxu0 %v99
    %122 = vmatmul.f32.gmra.mxu0 %v104
    %v123 = vpop.f32.mrf.mxu0
    %v124 = vadd.f32 0.0, %v123
    %125 = vdwg.mxu0
    %v126 = vld [vmem:[%s85] sm:$0x1]
    %v128 = vperm.slane %v126, 0
    %v131 = vsel %vm102, %v94, 0
    %v134 = vsel %vm102, %v95, 0
    %v137 = vsel %vm102, %v96, 0
    %v140 = vsel %vm102, %v97, 0
    %v143 = vsel %vm102, %v98, 0
    %145 = vmatpush.xpose.msra.mxu0 0.0
    %146 = vmatpush.xpose.msra.mxu0 0.0
    %147 = vmatpush.xpose.msra.mxu0 0.0
    %148 = vmatpush.xpose.msra.mxu0 0.0
    %149 = vmatpush.xpose.msra.mxu0 0.0
    %150 = vmatpush.xpose.msra.mxu0 0.0
    %151 = vmatpush.xpose.msra.mxu0 0.0
    %152 = vmatpush.xpose.msra.mxu0 0.0
    %153 = vmatpush.xpose.msra.mxu0 0.0
    %154 = vmatpush.xpose.msra.mxu0 0.0
    %155 = vmatpush.xpose.msra.mxu0 0.0
    %156 = vmatpush.xpose.msra.mxu0 0.0
    %157 = vmatpush.xpose.msra.mxu0 %v143
    %158 = vmatpush.xpose.msra.mxu0 %v140
    %159 = vmatpush.xpose.msra.mxu0 %v137
    %160 = vmatpush.xpose.msra.mxu0 %v134
    %161 = vmatmul.f32.gmra.mxu0 %v131
    %v162 = vpop.f32.mrf.mxu0
    %v163 = vadd.f32 %v128, %v162
    %164 = vdwg.mxu0
    %v165 = vtanh.pop %v163
    %v166 = vmul.f32 %v165, %v165
    %v167 = vsub.f32 %v166, 1.0
    %v168 = vmul.f32 %v167, %v124
    %vm169 = vcmask 261120
    %v171 = vsel %vm169, %v168, 0
    %173 = vmatpush.msra.mxu0 0.0
    %174 = vmatpush.msra.mxu0 0.0
    %175 = vmatpush.msra.mxu0 0.0
    %176 = vmatpush.msra.mxu0 0.0
    %177 = vmatpush.msra.mxu0 0.0
    %178 = vmatpush.msra.mxu0 0.0
    %179 = vmatpush.msra.mxu0 0.0
    %180 = vmatpush.msra.mxu0 0.0
    %181 = vmatpush.msra.mxu0 0.0
    %182 = vmatpush.msra.mxu0 0.0
    %183 = vmatpush.msra.mxu0 0.0
    %184 = vmatpush.msra.mxu0 0.0
    %185 = vmatpush.msra.mxu0 %v98
    %186 = vmatpush.msra.mxu0 %v97
    %187 = vmatpush.msra.mxu0 %v96
    %188 = vmatpush.msra.mxu0 %v95
    %189 = vmatmul.f32.gmra.mxu0 %v171
    %v190 = vpop.f32.mrf.mxu0
    %v191 = vadd.f32 0.0, %v190
    %192 = vdwg.mxu0
    %vm193 = vcmask 123904
    %194 = vst.msk [vmem:[#allocation4] sm:$0x3] %vm193, %v191
    // Predicated region
    $region22: #{adj_dynamics_forward.1} parent=1 // pred_check
      _
    $region23: #{adj_dynamics_forward.1} parent=1 // pred_check_branch
      %196 = sbr.rel (0) target = $region25
    $region24: #{adj_dynamics_forward.1} parent=1 // pred_region
      %198 = vsyncadd [#allocation5], 0
      %s200 = sshll.u32 [#allocation4], 4
      %s201 = int_to_ptr.vmem [resolvable:$true] %s200
      %s202 = sshll.u32 %s6, 4
      %s203 = int_to_ptr.hbm [resolvable:$true] %s202
      %205 = dma.vmem_to_hbm [thread:$0]  %s201, 32, %s203, [#allocation5]
    $region25: #{adj_dynamics_forward.1} parent=1 // pred_fallthru
      _
    // Predicated region
    $region26: #{adj_dynamics_forward.1} parent=1 // pred_check
      _
    $region27: #{adj_dynamics_forward.1} parent=1 // pred_check_branch
      %207 = sbr.rel (0) target = $region29
    $region28: #{adj_dynamics_forward.1} parent=1 // pred_region
      %209 = dma.done [#allocation5], 32
    $region29: #{adj_dynamics_forward.1} parent=1 // pred_fallthru
      _
    %210 = vsyncpa [#allocation5], 1

</llo_original>
